<compile_context>
chip_gen: v6e
topology: v6e:2x2x1
jax: 0.10.0
libtpu: 0.0.40
codegen_flags: <defaults>
</compile_context>

<pallas_src>
import numpy as np
import jax
import jax.numpy as jnp
from jax.experimental import pallas as pl
from jax.experimental.pallas import tpu as pltpu

# Fixed JPEG coefficients: out[c] = sum_k _MAT[c, k] * in[k] + _SHIFT[c]
_MAT = np.array(
    [[0.299, 0.587, 0.114],
     [-0.168736, -0.331264, 0.5],
     [0.5, -0.418688, -0.081312]],
    dtype=np.float32,
)
_SHIFT = np.array([0.0, 128.0, 128.0], dtype=np.float32)

_LANE = 128
_SUBLANE = 8
# Per-array, per-block budget (f32, lane-padded). in+out double-buffered -> <=24 MiB.
_TARGET_BLOCK_BYTES = 6 * 1024 * 1024


def _round_up(x, m):
    return ((x + m - 1) // m) * m


def _ycbcr_planar_kernel(x_ref, o_ref):
    # x_ref / o_ref: (1, 3, h_tile, W) VMEM blocks; lanes = W (dense DMAs).
    r = x_ref[0, 0].astype(jnp.float32)
    g = x_ref[0, 1].astype(jnp.float32)
    b = x_ref[0, 2].astype(jnp.float32)
    for c in range(3):  # static unroll over the 3 output channels (VPU only)
        acc = (float(_MAT[c, 0]) * r
               + float(_MAT[c, 1]) * g
               + float(_MAT[c, 2]) * b)
        s = float(_SHIFT[c])
        if s != 0.0:  # skip the +0.0 for the Y channel
            acc = acc + s
        o_ref[0, c] = acc


def _pick_h_tile(B, H, W):
    """Fixed-budget row tile; cdiv grid handles the ragged tail."""
    w_pad = _round_up(max(W, 1), _LANE)
    row_bytes = 3 * w_pad * 4            # one image row, 3 channels, f32
    h_tile = max(_SUBLANE, _TARGET_BLOCK_BYTES // row_bytes)
    if B == 1 and H > _SUBLANE:
        # Keep >= 2 spatial blocks so both v7x TensorCores get work.
        h_tile = min(h_tile, _round_up(pl.cdiv(H, 2), _SUBLANE))
    if h_tile >= H:
        return H                          # full-height block (full-dim is legal)
    r = 32 if h_tile >= 32 else _SUBLANE  # 32 keeps narrow dtypes sublane-friendly
    h_tile = (h_tile // r) * r
    return max(h_tile, _SUBLANE)


def rgb_to_ycbcr_jpeg_planar(image):
    """(B, 3, H, W) any float/int dtype -> (B, 3, H, W) float32 YCbCr (planar)."""
    B, C, H, W = image.shape
    assert C == 3

    h_tile = _pick_h_tile(B, H, W)
    grid = (B, pl.cdiv(H, h_tile))
    block = (1, 3, h_tile, W)

    w_pad = _round_up(W, _LANE)
    block_bytes = 3 * h_tile * w_pad * 4
    vmem_limit = max(32 * 1024 * 1024, 4 * block_bytes + (2 << 20))

    return pl.pallas_call(
        _ycbcr_planar_kernel,
        out_shape=jax.ShapeDtypeStruct((B, 3, H, W), jnp.float32),
        grid=grid,
        in_specs=[pl.BlockSpec(block, lambda b, h: (b, 0, h, 0))],
        out_specs=pl.BlockSpec(block, lambda b, h: (b, 0, h, 0)),
        compiler_params=pltpu.CompilerParams(
            dimension_semantics=("parallel", "parallel"),
            vmem_limit_bytes=vmem_limit,
        ),
    )(image)


def rgb_to_ycbcr_jpeg(image):
    """Module-compatible entry point: (B, 3, H, W) -> (B, H, W, 3) float32."""
    out = rgb_to_ycbcr_jpeg_planar(image)
    # TODO(synk): downstream fused JPEG stages should use the planar output
    # above directly; this permute exists only to honor the nn.Module's NHWC
    # output contract.
    return jnp.transpose(out, (0, 2, 3, 1))


def _reference(image):
    matrix = jnp.asarray(_MAT.T, dtype=jnp.float32)
    shift = jnp.asarray(_SHIFT, dtype=jnp.float32)
    img = jnp.transpose(image.astype(jnp.float32), (0, 2, 3, 1))
    return jnp.tensordot(img, matrix, axes=1) + shift


if __name__ == "__main__":
    key = jax.random.PRNGKey(0)

    # Primary small test (matches the module's expected layout).
    B, C, H, W = 2, 3, 16, 16
    image = jax.random.uniform(key, (B, C, H, W), dtype=jnp.float32) * 255.0
    out = jax.block_until_ready(rgb_to_ycbcr_jpeg(image))
    assert out.shape == (B, H, W, 3)
    np.testing.assert_allclose(np.asarray(out), np.asarray(_reference(image)),
                               rtol=1e-5, atol=1e-4)

    # Second tiny test: B=1 with a ragged last H block (exercises cdiv grid +
    # masked tail + the >=2-spatial-blocks rule for v7x).
    image2 = jax.random.uniform(jax.random.PRNGKey(0), (1, 3, 20, 16),
                                dtype=jnp.float32) * 255.0
    out2 = jax.block_until_ready(rgb_to_ycbcr_jpeg(image2))
    assert out2.shape == (1, 20, 16, 3)
    np.testing.assert_allclose(np.asarray(out2), np.asarray(_reference(image2)),
                               rtol=1e-5, atol=1e-4)

    print("KERNEL_OK")
</pallas_src>

<mosaic_0001>
module attributes {stable_mosaic.version = 11 : i64} {
  func.func @_ycbcr_planar_kernel(%arg0: i32, %arg1: i32, %arg2: memref<1x3x16x16xf32, #tpu.memory_space<vmem>>, %arg3: memref<1x3x16x16xf32, #tpu.memory_space<vmem>>) attributes {dimension_semantics = [#tpu.dimension_semantics<parallel>, #tpu.dimension_semantics<parallel>], iteration_bounds = array<i64: 2, 1>, scalar_prefetch = 0 : i64, scratch_operands = 0 : i64, tpu.core_type = #tpu.core_type<tc>, window_params = [{transform_indices = @transform_0, window_bounds = array<i64: 1, 3, 16, 16>}, {transform_indices = @transform_1, window_bounds = array<i64: 1, 3, 16, 16>}]} {
    %c0 = arith.constant 0 : index
    %c0_0 = arith.constant 0 : index
    %c0_1 = arith.constant 0 : index
    %c0_2 = arith.constant 0 : index
    %0 = vector.load %arg2[%c0, %c0_0, %c0_1, %c0_2] : memref<1x3x16x16xf32, #tpu.memory_space<vmem>>, vector<1x1x16x16xf32>
    %1 = vector.shape_cast %0 : vector<1x1x16x16xf32> to vector<16x16xf32>
    %c0_3 = arith.constant 0 : index
    %c1 = arith.constant 1 : index
    %c0_4 = arith.constant 0 : index
    %c0_5 = arith.constant 0 : index
    %2 = vector.load %arg2[%c0_3, %c1, %c0_4, %c0_5] : memref<1x3x16x16xf32, #tpu.memory_space<vmem>>, vector<1x1x16x16xf32>
    %3 = vector.shape_cast %2 : vector<1x1x16x16xf32> to vector<16x16xf32>
    %c0_6 = arith.constant 0 : index
    %c2 = arith.constant 2 : index
    %c0_7 = arith.constant 0 : index
    %c0_8 = arith.constant 0 : index
    %4 = vector.load %arg2[%c0_6, %c2, %c0_7, %c0_8] : memref<1x3x16x16xf32, #tpu.memory_space<vmem>>, vector<1x1x16x16xf32>
    %5 = vector.shape_cast %4 : vector<1x1x16x16xf32> to vector<16x16xf32>
    %cst = arith.constant 2.990000e-01 : f32
    %6 = vector.broadcast %cst : f32 to vector<16x16xf32>
    %7 = arith.mulf %6, %1 : vector<16x16xf32>
    %cst_9 = arith.constant 5.870000e-01 : f32
    %8 = vector.broadcast %cst_9 : f32 to vector<16x16xf32>
    %9 = arith.mulf %8, %3 : vector<16x16xf32>
    %10 = arith.addf %7, %9 : vector<16x16xf32>
    %cst_10 = arith.constant 1.140000e-01 : f32
    %11 = vector.broadcast %cst_10 : f32 to vector<16x16xf32>
    %12 = arith.mulf %11, %5 : vector<16x16xf32>
    %13 = arith.addf %10, %12 : vector<16x16xf32>
    %c0_11 = arith.constant 0 : index
    %c0_12 = arith.constant 0 : index
    %c0_13 = arith.constant 0 : index
    %c0_14 = arith.constant 0 : index
    %14 = vector.load %arg3[%c0_11, %c0_12, %c0_13, %c0_14] : memref<1x3x16x16xf32, #tpu.memory_space<vmem>>, vector<1x1x16x16xf32>
    %15 = vector.shape_cast %14 : vector<1x1x16x16xf32> to vector<16x16xf32>
    %16 = vector.shape_cast %13 : vector<16x16xf32> to vector<1x1x16x16xf32>
    tpu.vector_store %arg3[%c0_11, %c0_12, %c0_13, %c0_14], %16 {strides = array<i32>} : memref<1x3x16x16xf32, #tpu.memory_space<vmem>>, vector<1x1x16x16xf32>,
    %cst_15 = arith.constant -1.687360e-01 : f32
    %17 = vector.broadcast %cst_15 : f32 to vector<16x16xf32>
    %18 = arith.mulf %17, %1 : vector<16x16xf32>
    %cst_16 = arith.constant -3.312640e-01 : f32
    %19 = vector.broadcast %cst_16 : f32 to vector<16x16xf32>
    %20 = arith.mulf %19, %3 : vector<16x16xf32>
    %21 = arith.addf %18, %20 : vector<16x16xf32>
    %cst_17 = arith.constant 5.000000e-01 : f32
    %22 = vector.broadcast %cst_17 : f32 to vector<16x16xf32>
    %23 = arith.mulf %22, %5 : vector<16x16xf32>
    %24 = arith.addf %21, %23 : vector<16x16xf32>
    %cst_18 = arith.constant 1.280000e+02 : f32
    %25 = vector.broadcast %cst_18 : f32 to vector<16x16xf32>
    %26 = arith.addf %24, %25 : vector<16x16xf32>
    %c0_19 = arith.constant 0 : index
    %c1_20 = arith.constant 1 : index
    %c0_21 = arith.constant 0 : index
    %c0_22 = arith.constant 0 : index
    %27 = vector.load %arg3[%c0_19, %c1_20, %c0_21, %c0_22] : memref<1x3x16x16xf32, #tpu.memory_space<vmem>>, vector<1x1x16x16xf32>
    %28 = vector.shape_cast %27 : vector<1x1x16x16xf32> to vector<16x16xf32>
    %29 = vector.shape_cast %26 : vector<16x16xf32> to vector<1x1x16x16xf32>
    tpu.vector_store %arg3[%c0_19, %c1_20, %c0_21, %c0_22], %29 {strides = array<i32>} : memref<1x3x16x16xf32, #tpu.memory_space<vmem>>, vector<1x1x16x16xf32>,
    %cst_23 = arith.constant 5.000000e-01 : f32
    %30 = vector.broadcast %cst_23 : f32 to vector<16x16xf32>
    %31 = arith.mulf %30, %1 : vector<16x16xf32>
    %cst_24 = arith.constant -4.186880e-01 : f32
    %32 = vector.broadcast %cst_24 : f32 to vector<16x16xf32>
    %33 = arith.mulf %32, %3 : vector<16x16xf32>
    %34 = arith.addf %31, %33 : vector<16x16xf32>
    %cst_25 = arith.constant -8.131200e-02 : f32
    %35 = vector.broadcast %cst_25 : f32 to vector<16x16xf32>
    %36 = arith.mulf %35, %5 : vector<16x16xf32>
    %37 = arith.addf %34, %36 : vector<16x16xf32>
    %cst_26 = arith.constant 1.280000e+02 : f32
    %38 = vector.broadcast %cst_26 : f32 to vector<16x16xf32>
    %39 = arith.addf %37, %38 : vector<16x16xf32>
    %c0_27 = arith.constant 0 : index
    %c2_28 = arith.constant 2 : index
    %c0_29 = arith.constant 0 : index
    %c0_30 = arith.constant 0 : index
    %40 = vector.load %arg3[%c0_27, %c2_28, %c0_29, %c0_30] : memref<1x3x16x16xf32, #tpu.memory_space<vmem>>, vector<1x1x16x16xf32>
    %41 = vector.shape_cast %40 : vector<1x1x16x16xf32> to vector<16x16xf32>
    %42 = vector.shape_cast %39 : vector<16x16xf32> to vector<1x1x16x16xf32>
    tpu.vector_store %arg3[%c0_27, %c2_28, %c0_29, %c0_30], %42 {strides = array<i32>} : memref<1x3x16x16xf32, #tpu.memory_space<vmem>>, vector<1x1x16x16xf32>,
    return
  }
  func.func @transform_0(%arg0: i32, %arg1: i32) -> (i32, i32, i32, i32) {
    %c0_i32 = arith.constant 0 : i32
    %c0_i32_0 = arith.constant 0 : i32
    %c0_i32_1 = arith.constant 0 : i32
    return %arg0, %c0_i32, %arg1, %c0_i32_0 : i32, i32, i32, i32
  }
  func.func @transform_1(%arg0: i32, %arg1: i32) -> (i32, i32, i32, i32) {
    %c0_i32 = arith.constant 0 : i32
    %c0_i32_0 = arith.constant 0 : i32
    %c0_i32_1 = arith.constant 0 : i32
    return %arg0, %c0_i32, %arg1, %c0_i32_0 : i32, i32, i32, i32
  }
}

</mosaic_0001>

<llo_original>
// kernel: tpu_custom_call.1
$region0: #{tpu_custom_call.1}
  #allocation0 [shape = 'u32[]', space=smem, size = 0x4, offset = 0x4, fixed_abs, tag = 'smem constant byte address 0x4 - core index']
  #allocation1 [shape = 'u32[144,128]{1,0:T(1,128)}', space=vmem, size = 0x12000, scoped, tag = 'internal scratch']
  %s0 = inlined_call_operand.hbm [shape: f32[2,3,16,16], index: 0, kind: input, shape index: {}]
  %s1 = inlined_call_operand.hbm [shape: f32[2,3,16,16], index: 1, kind: output, shape index: {}]
  %s2 = sld [smem:[#allocation0]]
  $region41: #{tpu_custom_call.1} parent=0
    _
  %s4 = ssub.s32 1, %s2
  %s5 = scalar_select 0, %s4, %s2
  $region1: #{tpu_custom_call.1} parent=0
    #allocation2 [shape = 'u8[49152]{0}', space=vmem, size = 0xc000, scoped, tag = 'input window, operand 0']
    #allocation3 [shape = 's32[2]{0}', space=sflag, size = 0x8, scoped, tag = 'scoped memory for tpu_custom_call.1']
    #allocation4 [shape = 's32[2]{0}', space=sflag, size = 0x8, scoped, tag = 'scoped memory for tpu_custom_call.1']
    #allocation5 [shape = 'u8[49152]{0}', space=vmem, size = 0xc000, scoped, tag = 'output window, operand 0']
    %6 = vsyncpa [#allocation3], 0
    %s7 = scalar_lea.sflag [#allocation3], 1
    %8 = vsyncpa %s7, 0
    %9 = vsyncpa [#allocation4], 0
    %s10 = scalar_lea.sflag [#allocation4], 1
    %11 = vsyncpa %s10, 0
    loop: start=0, step=1, limit=4
    $region2: #{tpu_custom_call.1} parent=1 // loop_pre_header
      _
    $region3: #{tpu_custom_call.1} parent=1 // loop_header
      %s13 = sphi 0, %s17
      %p14 = scmp.ge.s32.totalorder %s13, 4
      %s20 = sphi 0, %s32
      %s21 = sphi 0, %s28
      %s22 = sphi 0, %s20
      %s23 = sphi 0, %s21
      %s24 = sphi 0, %s22
      %s25 = sphi 0, %s23
      %s37 = sphi 0, %s39
      %s40 = sphi 0, %s37
      %s41 = sphi 0, %s40
      %s57 = sphi 0, %s41
      %s65 = sphi 0, %s67
      %s68 = sphi 0, %s65
      %s69 = sphi 0, %s68
      %s85 = sphi 0, %s69
    $region4: #{tpu_custom_call.1} parent=1 // loop_header_branch
      %16 = sbr.rel (%p14) target = $region8
    $region5: #{tpu_custom_call.1} parent=1 // loop_body
      %s18 = ssub.s32 %s13, 1
      %s19 = ssub.s32 %s13, 2
      %s26 = sadd.s32 1, %s21
      %p27 = scmp.ge.s32.totalorder %s26, 1
      %s28 = scalar_select %p27, 0, %s26
      %s29 = sadd.s32 1, %s20
      %s30 = scalar_select %p27, %s29, %s20
      %p31 = scmp.ge.s32.totalorder %s30, 2
      %s32 = scalar_select %p31, 0, %s30
      %s33 = ssub.s32 %s20, %s32
      %s34 = ssub.s32 %s21, %s28
      %s35 = sor.u32 %s33, %s34
      %p36 = scmp.eq.s32.totalorder %s35, 0
      %s38 = sadd.s32 %s37, 1
      %s39 = scalar_select %p36, %s37, %s38
      %p42 = pneg %p36
      %p43 = scmp.eq.s32.totalorder %s13, 1
      %p44 = por %p42, %p43
      %p45 = scmp.ne.s32.totalorder %s37, %s40
      %p46 = scmp.eq.s32.totalorder %s13, 0
      %p47 = por %p45, %p46
      %p48 = scmp.ne.s32.totalorder %s37, %s40
      %p49 = scmp.eq.s32.totalorder %s18, 1
      %p50 = por %p48, %p49
      %p51 = scmp.ne.s32.totalorder %s40, %s41
      %p52 = scmp.eq.s32.totalorder %s18, 0
      %p53 = por %p51, %p52
      %p54 = scmp.ne.s32.totalorder %s40, %s41
      %p55 = scmp.eq.s32.totalorder %s19, 1
      %p56 = por %p54, %p55
      %p58 = scmp.ne.s32.totalorder %s41, %s57
      %p59 = scmp.eq.s32.totalorder %s19, 0
      %p60 = por %p58, %p59
      %s61 = ssub.s32 %s20, %s32
      %s62 = ssub.s32 %s21, %s28
      %s63 = sor.u32 %s61, %s62
      %p64 = scmp.eq.s32.totalorder %s63, 0
      %s66 = sadd.s32 %s65, 1
      %s67 = scalar_select %p64, %s65, %s66
      %p70 = pneg %p64
      %p71 = scmp.eq.s32.totalorder %s13, 1
      %p72 = por %p70, %p71
      %p73 = scmp.ne.s32.totalorder %s65, %s68
      %p74 = scmp.eq.s32.totalorder %s13, 0
      %p75 = por %p73, %p74
      %p76 = scmp.ne.s32.totalorder %s65, %s68
      %p77 = scmp.eq.s32.totalorder %s18, 1
      %p78 = por %p76, %p77
      %p79 = scmp.ne.s32.totalorder %s68, %s69
      %p80 = scmp.eq.s32.totalorder %s18, 0
      %p81 = por %p79, %p80
      %p82 = scmp.ne.s32.totalorder %s68, %s69
      %p83 = scmp.eq.s32.totalorder %s19, 1
      %p84 = por %p82, %p83
      %p86 = scmp.ne.s32.totalorder %s69, %s85
      %p87 = scmp.eq.s32.totalorder %s19, 0
      %p88 = por %p86, %p87
      %p89 = scmp.le.s32.totalorder 1, %s13
      %p90 = scmp.lt.s32.totalorder %s13, 3
      %p91 = pnand %p89, %p90
      %p92 = pneg %p91
      // Predicated region
      $region9: #{tpu_custom_call.1} parent=5 // pred_check
        _
      $region10: #{tpu_custom_call.1} parent=5 // pred_check_branch
        %94 = sbr.rel (%p91) target = $region12
      $region11: #{tpu_custom_call.1} parent=5 // pred_region
        %s95 = ssub.s32 %s13, 1
      $region12: #{tpu_custom_call.1} parent=5 // pred_fallthru
        _
      %p96 = scmp.lt.s32.totalorder %s13, 2
      // Predicated region
      $region13: #{tpu_custom_call.1} parent=5 // pred_check
        %p97 = pneg %p96
      $region14: #{tpu_custom_call.1} parent=5 // pred_check_branch
        %99 = sbr.rel (%p97) target = $region16
      $region15: #{tpu_custom_call.1} parent=5 // pred_region
        // Predicated region
        $region17: #{tpu_custom_call.1} parent=15 // pred_check
          %p100 = pneg %p47
        $region18: #{tpu_custom_call.1} parent=15 // pred_check_branch
          %102 = sbr.rel (%p100) target = $region20
        $region19: #{tpu_custom_call.1} parent=15 // pred_region
          %s103 = sand.u32 %s37, 1
          %s104 = scalar_lea.sflag [#allocation3], %s103
          %s105 = sand.u32 %s37, 1
          %s106 = smul.addr %s105, 48
          %s107 = scalar_lea.vmem [#allocation2], %s106
          %s108 = smul.u32 2, %s21
          %s110 = ssub.s32 768, 768
          %111 = vsyncadd %s104, %s110
          %s112 = smul.addr %s20, 6
          %s113 = sadd.s32 %s108, %s112
          %s114 = smul.addr %s113, 128
          %s115 = scalar_lea.hbm %s0, %s114
          %s116 = sshll.u32 %s107, 4
          %s117 = int_to_ptr.vmem [resolvable:$true] %s116
          %122 = dma.hbm_to_vmem [thread:$0]  %s115, 768, %s117, %s104, 128, 128, 8
        $region20: #{tpu_custom_call.1} parent=15 // pred_fallthru
          _
      $region16: #{tpu_custom_call.1} parent=5 // pred_fallthru
        _
      %p123 = scmp.le.s32.totalorder 1, %s13
      %p124 = scmp.lt.s32.totalorder %s13, 3
      %p125 = pnand %p123, %p124
      %p126 = pneg %p125
      // Predicated region
      $region21: #{tpu_custom_call.1} parent=5 // pred_check
        _
      $region22: #{tpu_custom_call.1} parent=5 // pred_check_branch
        %128 = sbr.rel (%p125) target = $region24
      $region23: #{tpu_custom_call.1} parent=5 // pred_region
        %s129 = ssub.s32 %s13, 1
        %s130 = sand.u32 %s40, 1
        %s131 = scalar_lea.sflag [#allocation3], %s130
        %s132 = sand.u32 %s40, 1
        %s133 = smul.addr %s132, 48
        %s134 = scalar_lea.vmem [#allocation2], %s133
        // Predicated region
        $region25: #{tpu_custom_call.1} parent=23 // pred_check
          %p135 = pneg %p53
        $region26: #{tpu_custom_call.1} parent=23 // pred_check_branch
          %137 = sbr.rel (%p135) target = $region28
        $region27: #{tpu_custom_call.1} parent=23 // pred_region
          %138 = dma.done %s131, 768
        $region28: #{tpu_custom_call.1} parent=23 // pred_fallthru
          _
        %s139 = sand.u32 %s40, 1
        %s140 = scalar_lea.sflag [#allocation3], %s139
        %s141 = sand.u32 %s40, 1
        %s142 = smul.addr %s141, 48
        %s143 = scalar_lea.vmem [#allocation2], %s142
        %p144 = pneg %p53
        %p145 = pneg %p50
        %p146 = pneg %p81
        %p147 = pneg %p78
        %s148 = sand.u32 %s68, 1
        %s149 = scalar_lea.sflag [#allocation4], %s148
        %s150 = sand.u32 %s68, 1
        %s151 = smul.addr %s150, 48
        %s152 = scalar_lea.vmem [#allocation5], %s151
        %s153 = smul.u32 2, %s23
        %s154 = smul.u32 2, %s23
        %v155 = vld [vmem:[%s134] sm:$0xff]
        %v156 = vld [vmem:[%s134 + $0x8] sm:$0xff]
        %s157 = scalar_lea.vmem %s134, 16 [#allocation2]
        %v158 = vld [vmem:[%s157] sm:$0xff]
        %v159 = vld [vmem:[%s157 + $0x8] sm:$0xff]
        %s160 = scalar_lea.vmem %s134, 32 [#allocation2]
        %v161 = vld [vmem:[%s160] sm:$0xff]
        %v162 = vld [vmem:[%s160 + $0x8] sm:$0xff]
        %v163 = vmul.f32 %v155, 0.299
        %v164 = vmul.f32 %v156, 0.299
        %v165 = vmul.f32 %v158, 0.587
        %v166 = vmul.f32 %v159, 0.587
        %v167 = vadd.f32 %v163, %v165
        %v168 = vadd.f32 %v164, %v166
        %v169 = vmul.f32 %v161, 0.114
        %v170 = vmul.f32 %v162, 0.114
        %v171 = vadd.f32 %v167, %v169
        %v172 = vadd.f32 %v168, %v170
        %vm173 = vcmask 130048
        %174 = vst.msk [vmem:[%s152] sm:$0xff] %vm173, %v171
        %175 = vst.msk [vmem:[%s152 + $0x8] sm:$0xff] %vm173, %v172
        %v176 = vmul.f32 %v155, -0.168736
        %v177 = vmul.f32 %v156, -0.168736
        %v178 = vmul.f32 %v158, -0.331264
        %v179 = vmul.f32 %v159, -0.331264
        %v180 = vadd.f32 %v176, %v178
        %v181 = vadd.f32 %v177, %v179
        %v182 = vmul.f32 %v161, 0.5
        %v183 = vmul.f32 %v162, 0.5
        %v184 = vadd.f32 %v180, %v182
        %v185 = vadd.f32 %v181, %v183
        %v186 = vadd.f32 %v184, 128.0
        %v187 = vadd.f32 %v185, 128.0
        %s188 = scalar_lea.vmem %s152, 16 [#allocation5]
        %189 = vst.msk [vmem:[%s188] sm:$0xff] %vm173, %v186
        %190 = vst.msk [vmem:[%s188 + $0x8] sm:$0xff] %vm173, %v187
        %v191 = vmul.f32 %v155, 0.5
        %v192 = vmul.f32 %v156, 0.5
        %v193 = vmul.f32 %v158, -0.418688
        %v194 = vmul.f32 %v159, -0.418688
        %v195 = vadd.f32 %v191, %v193
        %v196 = vadd.f32 %v192, %v194
        %v197 = vmul.f32 %v161, -0.081312
        %v198 = vmul.f32 %v162, -0.081312
        %v199 = vadd.f32 %v195, %v197
        %v200 = vadd.f32 %v196, %v198
        %v201 = vadd.f32 %v199, 128.0
        %v202 = vadd.f32 %v200, 128.0
        %s203 = scalar_lea.vmem %s152, 32 [#allocation5]
        %204 = vst.msk [vmem:[%s203] sm:$0xff] %vm173, %v201
        %205 = vst.msk [vmem:[%s203 + $0x8] sm:$0xff] %vm173, %v202
        %s206 = sand.u32 %s68, 1
        %s207 = scalar_lea.sflag [#allocation4], %s206
        %s208 = sand.u32 %s68, 1
        %s209 = smul.addr %s208, 48
        %s210 = scalar_lea.vmem [#allocation5], %s209
        // Predicated region
        $region29: #{tpu_custom_call.1} parent=23 // pred_check
          %p211 = pneg %p78
        $region30: #{tpu_custom_call.1} parent=23 // pred_check_branch
          %213 = sbr.rel (%p211) target = $region32
        $region31: #{tpu_custom_call.1} parent=23 // pred_region
          %s214 = smul.u32 2, %s23
          %s216 = ssub.s32 768, 768
          %217 = vsyncadd %s207, %s216
          %s218 = smul.addr %s22, 6
          %s219 = sadd.s32 %s214, %s218
          %s220 = smul.addr %s219, 128
          %s221 = scalar_lea.hbm %s1, %s220
          %s222 = sshll.u32 %s210, 4
          %s223 = int_to_ptr.vmem [resolvable:$true] %s222
          %228 = dma.vmem_to_hbm [thread:$0]  %s223, 768, %s221, %s207, 128, 128, 8
        $region32: #{tpu_custom_call.1} parent=23 // pred_fallthru
          _
      $region24: #{tpu_custom_call.1} parent=5 // pred_fallthru
        _
      %p229 = scmp.le.s32.totalorder 2, %s13
      // Predicated region
      $region33: #{tpu_custom_call.1} parent=5 // pred_check
        %p230 = pneg %p229
      $region34: #{tpu_custom_call.1} parent=5 // pred_check_branch
        %232 = sbr.rel (%p230) target = $region36
      $region35: #{tpu_custom_call.1} parent=5 // pred_region
        %s233 = ssub.s32 %s13, 2
        // Predicated region
        $region37: #{tpu_custom_call.1} parent=35 // pred_check
          %p234 = pneg %p84
        $region38: #{tpu_custom_call.1} parent=35 // pred_check_branch
          %236 = sbr.rel (%p234) target = $region40
        $region39: #{tpu_custom_call.1} parent=35 // pred_region
          %s237 = sand.u32 %s69, 1
          %s238 = scalar_lea.sflag [#allocation4], %s237
          %s239 = sand.u32 %s69, 1
          %s240 = smul.addr %s239, 48
          %s241 = scalar_lea.vmem [#allocation5], %s240
          %242 = dma.done %s238, 768
        $region40: #{tpu_custom_call.1} parent=35 // pred_fallthru
          _
      $region36: #{tpu_custom_call.1} parent=5 // pred_fallthru
        _
    $region6: #{tpu_custom_call.1} parent=1 // loop_footer
      %s17 = sadd.s32 1, %s13
    $region7: #{tpu_custom_call.1} parent=1 // loop_footer_branch
      %12 = sbr.rel target = $region3
    $region8: #{tpu_custom_call.1} parent=1 // loop_exit
      _
    %243 = vsyncpa [#allocation3], 1
    %s244 = scalar_lea.sflag [#allocation3], 1
    %245 = vsyncpa %s244, 1
    %246 = vsyncpa [#allocation4], 1
    %s247 = scalar_lea.sflag [#allocation4], 1
    %248 = vsyncpa %s247, 1

</llo_original>
